<compile_context>
chip_gen: v5e
topology: v5e:2x2
jax: 0.10.0
libtpu: 0.0.40
codegen_flags: <defaults>
</compile_context>

<pallas_src>
import functools

import jax
import jax.numpy as jnp
from jax.experimental import pallas as pl
from jax.experimental.pallas import tpu as pltpu


IN_FEATURES = 4
HIDDEN = 64
OUT_FEATURES = 64


def _round_up(n, m):
    return ((n + m - 1) // m) * m


def _mlp_kernel(xt_ref, w1_ref, b1_ref, w2_ref, b2_ref, o_ref):
    # xt: [4,  TB]  (features on sublanes, batch on lanes)
    # w1: [64, 4]   (PyTorch nn.Linear layout [out, in])
    # b1: [64, 1]
    # w2: [64, 64]
    # b2: [64, 1]
    # o : [64, TB]  (lane-dense output tile)
    xt = xt_ref[...]
    w1 = w1_ref[...]

    # Layer 1: K=4 contraction as 4 unrolled VPU broadcast-FMAs; the bias is
    # folded into the accumulator init (single broadcast on first add).
    h = b1_ref[...]                                  # [64, 1] -> broadcasts once
    for k in range(IN_FEATURES):                     # static unroll (4 iters)
        h = h + w1[:, k:k + 1] * xt[k:k + 1, :]      # [64,1]*[1,TB] -> [64,TB]
    h = jnp.maximum(h, 0.0)

    # Layer 2: 64x64 contraction on the MXU, f32 accumulate.
    y = jnp.dot(w2_ref[...], h, preferred_element_type=jnp.float32) + b2_ref[...]
    y = jnp.maximum(y, 0.0)

    o_ref[...] = y.astype(o_ref.dtype)


@functools.partial(jax.jit, static_argnames=("block_b",))
def cartpole_mlp_forward(x, w1, b1, w2, b2, *, block_b=1024):
    """Forward pass of cartpole_mlp.

    x : [B, 4] float32
    w1: [64, 4], b1: [64]   (PyTorch nn.Linear layout)
    w2: [64, 64], b2: [64]
    returns [B, 64] float32
    """
    B = x.shape[0]
    # Batch tile: multiple of 128 lanes; cap at block_b, shrink for tiny B.
    tb = min(block_b, _round_up(B, 128))
    b_pad = _round_up(B, tb)

    # Transpose to [4, B] and zero-pad the batch (lane) axis up to b_pad.
    xt = jnp.pad(x.astype(jnp.float32).T, ((0, 0), (0, b_pad - B)))
    b1c = b1.reshape(HIDDEN, 1).astype(jnp.float32)
    b2c = b2.reshape(OUT_FEATURES, 1).astype(jnp.float32)

    grid = (b_pad // tb,)
    out_t = pl.pallas_call(
        _mlp_kernel,
        out_shape=jax.ShapeDtypeStruct((OUT_FEATURES, b_pad), jnp.float32),
        grid=grid,
        in_specs=[
            # x^T streams tile-by-tile along the batch (lane) axis.
            pl.BlockSpec((IN_FEATURES, tb), lambda i: (0, i)),
            # Weights / biases: constant index_map -> resident in VMEM.
            pl.BlockSpec((HIDDEN, IN_FEATURES), lambda i: (0, 0)),
            pl.BlockSpec((HIDDEN, 1), lambda i: (0, 0)),
            pl.BlockSpec((OUT_FEATURES, HIDDEN), lambda i: (0, 0)),
            pl.BlockSpec((OUT_FEATURES, 1), lambda i: (0, 0)),
        ],
        out_specs=pl.BlockSpec((OUT_FEATURES, tb), lambda i: (0, i)),
        compiler_params=pltpu.CompilerParams(
            # Independent batch tiles: shard across TensorCores on v7x.
            dimension_semantics=("parallel",),
        ),
    )(xt, w1.astype(jnp.float32), b1c, w2.astype(jnp.float32), b2c)

    # [64, b_pad] -> [B, 64]
    return out_t[:, :B].T


def init_params(key):
    """Deterministic init matching nn.Linear bounds, PyTorch layout."""
    k1, k2, k3, k4 = jax.random.split(key, 4)
    lim1 = 1.0 / jnp.sqrt(IN_FEATURES)
    lim2 = 1.0 / jnp.sqrt(HIDDEN)
    w1 = jax.random.uniform(k1, (HIDDEN, IN_FEATURES), jnp.float32, -lim1, lim1)
    b1 = jax.random.uniform(k2, (HIDDEN,), jnp.float32, -lim1, lim1)
    w2 = jax.random.uniform(k3, (OUT_FEATURES, HIDDEN), jnp.float32, -lim2, lim2)
    b2 = jax.random.uniform(k4, (OUT_FEATURES,), jnp.float32, -lim2, lim2)
    return w1, b1, w2, b2


if __name__ == "__main__":
    key = jax.random.PRNGKey(0)
    k_x, k_x2, k_p = jax.random.split(key, 3)
    w1, b1, w2, b2 = init_params(k_p)

    def ref(x):
        h = jnp.maximum(x @ w1.T + b1, 0.0)
        return jnp.maximum(h @ w2.T + b2, 0.0)

    # Small batch (CartPole observation dim = 4).
    x_small = jax.random.normal(k_x, (8, IN_FEATURES), dtype=jnp.float32)
    out_small = jax.block_until_ready(cartpole_mlp_forward(x_small, w1, b1, w2, b2))
    assert out_small.shape == (8, OUT_FEATURES)
    assert jnp.allclose(out_small, ref(x_small), atol=1e-5, rtol=1e-5)

    # Larger ragged batch: exercises grid > 1 and tail zero-padding.
    x_big = jax.random.normal(k_x2, (300, IN_FEATURES), dtype=jnp.float32)
    out_big = jax.block_until_ready(
        cartpole_mlp_forward(x_big, w1, b1, w2, b2, block_b=128))
    assert out_big.shape == (300, OUT_FEATURES)
    assert jnp.allclose(out_big, ref(x_big), atol=1e-5, rtol=1e-5)

    print("KERNEL_OK")
</pallas_src>

<mosaic_0001>
module attributes {stable_mosaic.version = 11 : i64} {
  func.func @_mlp_kernel(%arg0: i32, %arg1: memref<4x128xf32, #tpu.memory_space<vmem>>, %arg2: memref<64x4xf32, #tpu.memory_space<vmem>>, %arg3: memref<64x1xf32, #tpu.memory_space<vmem>>, %arg4: memref<64x64xf32, #tpu.memory_space<vmem>>, %arg5: memref<64x1xf32, #tpu.memory_space<vmem>>, %arg6: memref<64x128xf32, #tpu.memory_space<vmem>>) attributes {dimension_semantics = [#tpu.dimension_semantics<parallel>], iteration_bounds = array<i64: 1>, scalar_prefetch = 0 : i64, scratch_operands = 0 : i64, tpu.core_type = #tpu.core_type<tc>, window_params = [{transform_indices = @transform_0, window_bounds = array<i64: 4, 128>}, {pipeline_mode = #tpu.pipeline_mode<synchronous>, transform_indices = @transform_1, window_bounds = array<i64: 64, 4>}, {pipeline_mode = #tpu.pipeline_mode<synchronous>, transform_indices = @transform_2, window_bounds = array<i64: 64, 1>}, {pipeline_mode = #tpu.pipeline_mode<synchronous>, transform_indices = @transform_3, window_bounds = array<i64: 64, 64>}, {pipeline_mode = #tpu.pipeline_mode<synchronous>, transform_indices = @transform_4, window_bounds = array<i64: 64, 1>}, {transform_indices = @transform_5, window_bounds = array<i64: 64, 128>}]} {
    %c0 = arith.constant 0 : index
    %c0_0 = arith.constant 0 : index
    %0 = vector.load %arg1[%c0, %c0_0] : memref<4x128xf32, #tpu.memory_space<vmem>>, vector<4x128xf32>
    %c0_1 = arith.constant 0 : index
    %c0_2 = arith.constant 0 : index
    %1 = vector.load %arg2[%c0_1, %c0_2] : memref<64x4xf32, #tpu.memory_space<vmem>>, vector<64x4xf32>
    %c0_3 = arith.constant 0 : index
    %c0_4 = arith.constant 0 : index
    %2 = vector.load %arg3[%c0_3, %c0_4] : memref<64x1xf32, #tpu.memory_space<vmem>>, vector<64x1xf32>
    %3 = vector.extract_strided_slice %1 {offsets = [0, 0], sizes = [64, 1], strides = [1, 1]} : vector<64x4xf32> to vector<64x1xf32>
    %4 = vector.extract_strided_slice %0 {offsets = [0, 0], sizes = [1, 128], strides = [1, 1]} : vector<4x128xf32> to vector<1x128xf32>
    %5 = vector.broadcast %3 : vector<64x1xf32> to vector<64x128xf32>
    %6 = vector.broadcast %4 : vector<1x128xf32> to vector<64x128xf32>
    %7 = arith.mulf %5, %6 : vector<64x128xf32>
    %8 = vector.broadcast %2 : vector<64x1xf32> to vector<64x128xf32>
    %9 = arith.addf %8, %7 : vector<64x128xf32>
    %10 = vector.extract_strided_slice %1 {offsets = [0, 1], sizes = [64, 1], strides = [1, 1]} : vector<64x4xf32> to vector<64x1xf32>
    %11 = vector.extract_strided_slice %0 {offsets = [1, 0], sizes = [1, 128], strides = [1, 1]} : vector<4x128xf32> to vector<1x128xf32>
    %12 = vector.broadcast %10 : vector<64x1xf32> to vector<64x128xf32>
    %13 = vector.broadcast %11 : vector<1x128xf32> to vector<64x128xf32>
    %14 = arith.mulf %12, %13 : vector<64x128xf32>
    %15 = arith.addf %9, %14 : vector<64x128xf32>
    %16 = vector.extract_strided_slice %1 {offsets = [0, 2], sizes = [64, 1], strides = [1, 1]} : vector<64x4xf32> to vector<64x1xf32>
    %17 = vector.extract_strided_slice %0 {offsets = [2, 0], sizes = [1, 128], strides = [1, 1]} : vector<4x128xf32> to vector<1x128xf32>
    %18 = vector.broadcast %16 : vector<64x1xf32> to vector<64x128xf32>
    %19 = vector.broadcast %17 : vector<1x128xf32> to vector<64x128xf32>
    %20 = arith.mulf %18, %19 : vector<64x128xf32>
    %21 = arith.addf %15, %20 : vector<64x128xf32>
    %22 = vector.extract_strided_slice %1 {offsets = [0, 3], sizes = [64, 1], strides = [1, 1]} : vector<64x4xf32> to vector<64x1xf32>
    %23 = vector.extract_strided_slice %0 {offsets = [3, 0], sizes = [1, 128], strides = [1, 1]} : vector<4x128xf32> to vector<1x128xf32>
    %24 = vector.broadcast %22 : vector<64x1xf32> to vector<64x128xf32>
    %25 = vector.broadcast %23 : vector<1x128xf32> to vector<64x128xf32>
    %26 = arith.mulf %24, %25 : vector<64x128xf32>
    %27 = arith.addf %21, %26 : vector<64x128xf32>
    %cst = arith.constant 0.000000e+00 : f32
    %28 = vector.broadcast %cst : f32 to vector<64x128xf32>
    %29 = arith.maximumf %27, %28 : vector<64x128xf32>
    %c0_5 = arith.constant 0 : index
    %c0_6 = arith.constant 0 : index
    %30 = vector.load %arg4[%c0_5, %c0_6] : memref<64x64xf32, #tpu.memory_space<vmem>>, vector<64x64xf32>
    %cst_7 = arith.constant dense<0.000000e+00> : vector<64x128xf32>
    %31 = tpu.matmul %30, %29, %cst_7 {dimension_numbers = #tpu.dot_dimension_numbers<[1], [0], [0], [1], [0, 0, 1, 1], [], []>} : vector<64x64xf32>, vector<64x128xf32>, vector<64x128xf32> -> vector<64x128xf32>
    %c0_8 = arith.constant 0 : index
    %c0_9 = arith.constant 0 : index
    %32 = vector.load %arg5[%c0_8, %c0_9] : memref<64x1xf32, #tpu.memory_space<vmem>>, vector<64x1xf32>
    %33 = vector.broadcast %32 : vector<64x1xf32> to vector<64x128xf32>
    %34 = arith.addf %31, %33 : vector<64x128xf32>
    %cst_10 = arith.constant 0.000000e+00 : f32
    %35 = vector.broadcast %cst_10 : f32 to vector<64x128xf32>
    %36 = arith.maximumf %34, %35 : vector<64x128xf32>
    %c0_11 = arith.constant 0 : index
    %c0_12 = arith.constant 0 : index
    %37 = vector.load %arg6[%c0_11, %c0_12] : memref<64x128xf32, #tpu.memory_space<vmem>>, vector<64x128xf32>
    tpu.vector_store %arg6[%c0_11, %c0_12], %36 {strides = array<i32>} : memref<64x128xf32, #tpu.memory_space<vmem>>, vector<64x128xf32>,
    return
  }
  func.func @transform_0(%arg0: i32) -> (i32, i32) {
    %c0_i32 = arith.constant 0 : i32
    %c0_i32_0 = arith.constant 0 : i32
    return %c0_i32, %arg0 : i32, i32
  }
  func.func @transform_1(%arg0: i32) -> (i32, i32) {
    %c0_i32 = arith.constant 0 : i32
    %c0_i32_0 = arith.constant 0 : i32
    %c0_i32_1 = arith.constant 0 : i32
    return %c0_i32, %c0_i32_0 : i32, i32
  }
  func.func @transform_2(%arg0: i32) -> (i32, i32) {
    %c0_i32 = arith.constant 0 : i32
    %c0_i32_0 = arith.constant 0 : i32
    %c0_i32_1 = arith.constant 0 : i32
    return %c0_i32, %c0_i32_0 : i32, i32
  }
  func.func @transform_3(%arg0: i32) -> (i32, i32) {
    %c0_i32 = arith.constant 0 : i32
    %c0_i32_0 = arith.constant 0 : i32
    %c0_i32_1 = arith.constant 0 : i32
    return %c0_i32, %c0_i32_0 : i32, i32
  }
  func.func @transform_4(%arg0: i32) -> (i32, i32) {
    %c0_i32 = arith.constant 0 : i32
    %c0_i32_0 = arith.constant 0 : i32
    %c0_i32_1 = arith.constant 0 : i32
    return %c0_i32, %c0_i32_0 : i32, i32
  }
  func.func @transform_5(%arg0: i32) -> (i32, i32) {
    %c0_i32 = arith.constant 0 : i32
    %c0_i32_0 = arith.constant 0 : i32
    return %c0_i32, %arg0 : i32, i32
  }
}

</mosaic_0001>

<llo_original>
// kernel: cartpole_mlp_forward.1
$region0: #{cartpole_mlp_forward.1}
  #allocation0 [shape = 'u32[]', space=smem, size = 0x4, offset = 0x4, fixed_abs, tag = 'smem constant byte address 0x4 - core index']
  #allocation1 [shape = 'u32[72,128]{1,0:T(1,128)}', space=vmem, size = 0x9000, scoped, tag = 'internal scratch']
  %s0 = inlined_call_operand.vmem [shape: f32[4,128], index: 0, kind: input, shape index: {}]
  %s1 = inlined_call_operand.vmem [shape: f32[64,4], index: 1, kind: input, shape index: {}]
  %s2 = inlined_call_operand.vmem [shape: f32[64,1], index: 2, kind: input, shape index: {}]
  %s3 = inlined_call_operand.vmem [shape: f32[64,64], index: 3, kind: input, shape index: {}]
  %s4 = inlined_call_operand.vmem [shape: f32[64,1], index: 4, kind: input, shape index: {}]
  %s5 = inlined_call_operand.vmem [shape: f32[64,128], index: 5, kind: output, shape index: {}]
  %s6 = sld [smem:[#allocation0]]
  $region30: #{cartpole_mlp_forward.1} parent=0
    _
  %s8 = ssub.s32 1, %s6
  %s9 = scalar_select 0, %s8, %s6
  // Predicated region
  $region2: #{cartpole_mlp_forward.1} parent=0 // pred_check
    _
  $region3: #{cartpole_mlp_forward.1} parent=0 // pred_check_branch
    %11 = sbr.rel (0) target = $region5
  $region4: #{cartpole_mlp_forward.1} parent=0 // pred_region
    _
  $region5: #{cartpole_mlp_forward.1} parent=0 // pred_fallthru
    _
  // Predicated region
  $region6: #{cartpole_mlp_forward.1} parent=0 // pred_check
    _
  $region7: #{cartpole_mlp_forward.1} parent=0 // pred_check_branch
    %13 = sbr.rel (0) target = $region9
  $region8: #{cartpole_mlp_forward.1} parent=0 // pred_region
    _
  $region9: #{cartpole_mlp_forward.1} parent=0 // pred_fallthru
    _
  // Predicated region
  $region10: #{cartpole_mlp_forward.1} parent=0 // pred_check
    _
  $region11: #{cartpole_mlp_forward.1} parent=0 // pred_check_branch
    %15 = sbr.rel (0) target = $region13
  $region12: #{cartpole_mlp_forward.1} parent=0 // pred_region
    _
  $region13: #{cartpole_mlp_forward.1} parent=0 // pred_fallthru
    _
  // Predicated region
  $region14: #{cartpole_mlp_forward.1} parent=0 // pred_check
    _
  $region15: #{cartpole_mlp_forward.1} parent=0 // pred_check_branch
    %17 = sbr.rel (0) target = $region17
  $region16: #{cartpole_mlp_forward.1} parent=0 // pred_region
    _
  $region17: #{cartpole_mlp_forward.1} parent=0 // pred_fallthru
    _
  // Predicated region
  $region18: #{cartpole_mlp_forward.1} parent=0 // pred_check
    _
  $region19: #{cartpole_mlp_forward.1} parent=0 // pred_check_branch
    %19 = sbr.rel (0) target = $region21
  $region20: #{cartpole_mlp_forward.1} parent=0 // pred_region
    _
  $region21: #{cartpole_mlp_forward.1} parent=0 // pred_fallthru
    _
  %v20 = vld [vmem:[%s0] sm:$0xf]
  %v21 = vld [vmem:[%s1] sm:$0xff]
  %v22 = vld [vmem:[%s1 + $0x8] sm:$0xff]
  %v23 = vld [vmem:[%s1 + $0x10] sm:$0xff]
  %v24 = vld [vmem:[%s1 + $0x18] sm:$0xff]
  %v25 = vld [vmem:[%s1 + $0x20] sm:$0xff]
  %v26 = vld [vmem:[%s1 + $0x28] sm:$0xff]
  %v27 = vld [vmem:[%s1 + $0x30] sm:$0xff]
  %v28 = vld [vmem:[%s1 + $0x38] sm:$0xff]
  %v29 = vld [vmem:[%s2] sm:$0xff]
  %v30 = vld [vmem:[%s2 + $0x8] sm:$0xff]
  %v31 = vld [vmem:[%s2 + $0x10] sm:$0xff]
  %v32 = vld [vmem:[%s2 + $0x18] sm:$0xff]
  %v33 = vld [vmem:[%s2 + $0x20] sm:$0xff]
  %v34 = vld [vmem:[%s2 + $0x28] sm:$0xff]
  %v35 = vld [vmem:[%s2 + $0x30] sm:$0xff]
  %v36 = vld [vmem:[%s2 + $0x38] sm:$0xff]
  %38 = vset.pattern.permute.xlu0 0
  %39 = vperm.xlu0 %38, %v21
  %v40 = vpop.permute.xlu0 %39
  %43 = vset.pattern.permute.xlu0 0
  %44 = vperm.xlu0 %43, %v22
  %v45 = vpop.permute.xlu0 %44
  %48 = vset.pattern.permute.xlu0 0
  %49 = vperm.xlu0 %48, %v23
  %v50 = vpop.permute.xlu0 %49
  %53 = vset.pattern.permute.xlu0 0
  %54 = vperm.xlu0 %53, %v24
  %v55 = vpop.permute.xlu0 %54
  %58 = vset.pattern.permute.xlu0 0
  %59 = vperm.xlu0 %58, %v25
  %v60 = vpop.permute.xlu0 %59
  %63 = vset.pattern.permute.xlu0 0
  %64 = vperm.xlu0 %63, %v26
  %v65 = vpop.permute.xlu0 %64
  %68 = vset.pattern.permute.xlu0 0
  %69 = vperm.xlu0 %68, %v27
  %v70 = vpop.permute.xlu0 %69
  %73 = vset.pattern.permute.xlu0 0
  %74 = vperm.xlu0 %73, %v28
  %v75 = vpop.permute.xlu0 %74
  %v77 = vperm.slane %v20, 0
  %v78 = vmul.f32 %v40, %v77
  %v79 = vmul.f32 %v45, %v77
  %v80 = vmul.f32 %v50, %v77
  %v81 = vmul.f32 %v55, %v77
  %v82 = vmul.f32 %v60, %v77
  %v83 = vmul.f32 %v65, %v77
  %v84 = vmul.f32 %v70, %v77
  %v85 = vmul.f32 %v75, %v77
  %87 = vset.pattern.permute.xlu0 0
  %88 = vperm.xlu0 %87, %v29
  %v89 = vpop.permute.xlu0 %88
  %92 = vset.pattern.permute.xlu0 0
  %93 = vperm.xlu0 %92, %v30
  %v94 = vpop.permute.xlu0 %93
  %97 = vset.pattern.permute.xlu0 0
  %98 = vperm.xlu0 %97, %v31
  %v99 = vpop.permute.xlu0 %98
  %102 = vset.pattern.permute.xlu0 0
  %103 = vperm.xlu0 %102, %v32
  %v104 = vpop.permute.xlu0 %103
  %107 = vset.pattern.permute.xlu0 0
  %108 = vperm.xlu0 %107, %v33
  %v109 = vpop.permute.xlu0 %108
  %112 = vset.pattern.permute.xlu0 0
  %113 = vperm.xlu0 %112, %v34
  %v114 = vpop.permute.xlu0 %113
  %117 = vset.pattern.permute.xlu0 0
  %118 = vperm.xlu0 %117, %v35
  %v119 = vpop.permute.xlu0 %118
  %122 = vset.pattern.permute.xlu0 0
  %123 = vperm.xlu0 %122, %v36
  %v124 = vpop.permute.xlu0 %123
  %v126 = vadd.f32 %v89, %v78
  %v127 = vadd.f32 %v94, %v79
  %v128 = vadd.f32 %v99, %v80
  %v129 = vadd.f32 %v104, %v81
  %v130 = vadd.f32 %v109, %v82
  %v131 = vadd.f32 %v114, %v83
  %v132 = vadd.f32 %v119, %v84
  %v133 = vadd.f32 %v124, %v85
  %134 = vset.pattern.permute.xlu0 1
  %135 = vperm.xlu0 %134, %v21
  %v136 = vpop.permute.xlu0 %135
  %138 = vset.pattern.permute.xlu0 1
  %139 = vperm.xlu0 %138, %v22
  %v140 = vpop.permute.xlu0 %139
  %142 = vset.pattern.permute.xlu0 1
  %143 = vperm.xlu0 %142, %v23
  %v144 = vpop.permute.xlu0 %143
  %146 = vset.pattern.permute.xlu0 1
  %147 = vperm.xlu0 %146, %v24
  %v148 = vpop.permute.xlu0 %147
  %150 = vset.pattern.permute.xlu0 1
  %151 = vperm.xlu0 %150, %v25
  %v152 = vpop.permute.xlu0 %151
  %154 = vset.pattern.permute.xlu0 1
  %155 = vperm.xlu0 %154, %v26
  %v156 = vpop.permute.xlu0 %155
  %158 = vset.pattern.permute.xlu0 1
  %159 = vperm.xlu0 %158, %v27
  %v160 = vpop.permute.xlu0 %159
  %162 = vset.pattern.permute.xlu0 1
  %163 = vperm.xlu0 %162, %v28
  %v164 = vpop.permute.xlu0 %163
  %v166 = vperm.slane %v20, 1
  %v167 = vmul.f32 %v136, %v166
  %v168 = vmul.f32 %v140, %v166
  %v169 = vmul.f32 %v144, %v166
  %v170 = vmul.f32 %v148, %v166
  %v171 = vmul.f32 %v152, %v166
  %v172 = vmul.f32 %v156, %v166
  %v173 = vmul.f32 %v160, %v166
  %v174 = vmul.f32 %v164, %v166
  %v175 = vadd.f32 %v126, %v167
  %v176 = vadd.f32 %v127, %v168
  %v177 = vadd.f32 %v128, %v169
  %v178 = vadd.f32 %v129, %v170
  %v179 = vadd.f32 %v130, %v171
  %v180 = vadd.f32 %v131, %v172
  %v181 = vadd.f32 %v132, %v173
  %v182 = vadd.f32 %v133, %v174
  %183 = vset.pattern.permute.xlu0 2
  %184 = vperm.xlu0 %183, %v21
  %v185 = vpop.permute.xlu0 %184
  %187 = vset.pattern.permute.xlu0 2
  %188 = vperm.xlu0 %187, %v22
  %v189 = vpop.permute.xlu0 %188
  %191 = vset.pattern.permute.xlu0 2
  %192 = vperm.xlu0 %191, %v23
  %v193 = vpop.permute.xlu0 %192
  %195 = vset.pattern.permute.xlu0 2
  %196 = vperm.xlu0 %195, %v24
  %v197 = vpop.permute.xlu0 %196
  %199 = vset.pattern.permute.xlu0 2
  %200 = vperm.xlu0 %199, %v25
  %v201 = vpop.permute.xlu0 %200
  %203 = vset.pattern.permute.xlu0 2
  %204 = vperm.xlu0 %203, %v26
  %v205 = vpop.permute.xlu0 %204
  %207 = vset.pattern.permute.xlu0 2
  %208 = vperm.xlu0 %207, %v27
  %v209 = vpop.permute.xlu0 %208
  %211 = vset.pattern.permute.xlu0 2
  %212 = vperm.xlu0 %211, %v28
  %v213 = vpop.permute.xlu0 %212
  %v215 = vperm.slane %v20, 2
  %v216 = vmul.f32 %v185, %v215
  %v217 = vmul.f32 %v189, %v215
  %v218 = vmul.f32 %v193, %v215
  %v219 = vmul.f32 %v197, %v215
  %v220 = vmul.f32 %v201, %v215
  %v221 = vmul.f32 %v205, %v215
  %v222 = vmul.f32 %v209, %v215
  %v223 = vmul.f32 %v213, %v215
  %v224 = vadd.f32 %v175, %v216
  %v225 = vadd.f32 %v176, %v217
  %v226 = vadd.f32 %v177, %v218
  %v227 = vadd.f32 %v178, %v219
  %v228 = vadd.f32 %v179, %v220
  %v229 = vadd.f32 %v180, %v221
  %v230 = vadd.f32 %v181, %v222
  %v231 = vadd.f32 %v182, %v223
  %232 = vset.pattern.permute.xlu0 3
  %233 = vperm.xlu0 %232, %v21
  %v234 = vpop.permute.xlu0 %233
  %236 = vset.pattern.permute.xlu0 3
  %237 = vperm.xlu0 %236, %v22
  %v238 = vpop.permute.xlu0 %237
  %240 = vset.pattern.permute.xlu0 3
  %241 = vperm.xlu0 %240, %v23
  %v242 = vpop.permute.xlu0 %241
  %244 = vset.pattern.permute.xlu0 3
  %245 = vperm.xlu0 %244, %v24
  %v246 = vpop.permute.xlu0 %245
  %248 = vset.pattern.permute.xlu0 3
  %249 = vperm.xlu0 %248, %v25
  %v250 = vpop.permute.xlu0 %249
  %252 = vset.pattern.permute.xlu0 3
  %253 = vperm.xlu0 %252, %v26
  %v254 = vpop.permute.xlu0 %253
  %256 = vset.pattern.permute.xlu0 3
  %257 = vperm.xlu0 %256, %v27
  %v258 = vpop.permute.xlu0 %257
  %260 = vset.pattern.permute.xlu0 3
  %261 = vperm.xlu0 %260, %v28
  %v262 = vpop.permute.xlu0 %261
  %v264 = vperm.slane %v20, 3
  %v265 = vmul.f32 %v234, %v264
  %v266 = vmul.f32 %v238, %v264
  %v267 = vmul.f32 %v242, %v264
  %v268 = vmul.f32 %v246, %v264
  %v269 = vmul.f32 %v250, %v264
  %v270 = vmul.f32 %v254, %v264
  %v271 = vmul.f32 %v258, %v264
  %v272 = vmul.f32 %v262, %v264
  %v273 = vadd.f32 %v224, %v265
  %v274 = vadd.f32 %v225, %v266
  %v275 = vadd.f32 %v226, %v267
  %v276 = vadd.f32 %v227, %v268
  %v277 = vadd.f32 %v228, %v269
  %v278 = vadd.f32 %v229, %v270
  %v279 = vadd.f32 %v230, %v271
  %v280 = vadd.f32 %v231, %v272
  %v281 = vmax.f32 %v273, 0.0
  %v282 = vmax.f32 %v274, 0.0
  %v283 = vmax.f32 %v275, 0.0
  %v284 = vmax.f32 %v276, 0.0
  %v285 = vmax.f32 %v277, 0.0
  %v286 = vmax.f32 %v278, 0.0
  %v287 = vmax.f32 %v279, 0.0
  %v288 = vmax.f32 %v280, 0.0
  %v289 = vld [vmem:[%s3] sm:$0xff]
  %v290 = vld [vmem:[%s3 + $0x8] sm:$0xff]
  %v291 = vld [vmem:[%s3 + $0x10] sm:$0xff]
  %v292 = vld [vmem:[%s3 + $0x18] sm:$0xff]
  %v293 = vld [vmem:[%s3 + $0x20] sm:$0xff]
  %v294 = vld [vmem:[%s3 + $0x28] sm:$0xff]
  %v295 = vld [vmem:[%s3 + $0x30] sm:$0xff]
  %v296 = vld [vmem:[%s3 + $0x38] sm:$0xff]
  %v297 = vld [vmem:[%s4] sm:$0xff]
  %v298 = vld [vmem:[%s4 + $0x8] sm:$0xff]
  %v299 = vld [vmem:[%s4 + $0x10] sm:$0xff]
  %v300 = vld [vmem:[%s4 + $0x18] sm:$0xff]
  %v301 = vld [vmem:[%s4 + $0x20] sm:$0xff]
  %v302 = vld [vmem:[%s4 + $0x28] sm:$0xff]
  %v303 = vld [vmem:[%s4 + $0x30] sm:$0xff]
  %v304 = vld [vmem:[%s4 + $0x38] sm:$0xff]
  %306 = vset.pattern.permute.xlu0 0
  %307 = vperm.xlu0 %306, %v297
  %v308 = vpop.permute.xlu0 %307
  %311 = vset.pattern.permute.xlu0 0
  %312 = vperm.xlu0 %311, %v298
  %v313 = vpop.permute.xlu0 %312
  %316 = vset.pattern.permute.xlu0 0
  %317 = vperm.xlu0 %316, %v299
  %v318 = vpop.permute.xlu0 %317
  %321 = vset.pattern.permute.xlu0 0
  %322 = vperm.xlu0 %321, %v300
  %v323 = vpop.permute.xlu0 %322
  %326 = vset.pattern.permute.xlu0 0
  %327 = vperm.xlu0 %326, %v301
  %v328 = vpop.permute.xlu0 %327
  %331 = vset.pattern.permute.xlu0 0
  %332 = vperm.xlu0 %331, %v302
  %v333 = vpop.permute.xlu0 %332
  %336 = vset.pattern.permute.xlu0 0
  %337 = vperm.xlu0 %336, %v303
  %v338 = vpop.permute.xlu0 %337
  %341 = vset.pattern.permute.xlu0 0
  %342 = vperm.xlu0 %341, %v304
  %v343 = vpop.permute.xlu0 %342
  %vm345 = vcmask 523264
  %v347 = vsel %vm345, %v289, 0
  %v350 = vsel %vm345, %v290, 0
  %v353 = vsel %vm345, %v291, 0
  %v356 = vsel %vm345, %v292, 0
  %v359 = vsel %vm345, %v293, 0
  %v362 = vsel %vm345, %v294, 0
  %v365 = vsel %vm345, %v295, 0
  %v368 = vsel %vm345, %v296, 0
  %370 = vmatpush.msra.mxu0 0.0
  %371 = vmatpush.msra.mxu0 0.0
  %372 = vmatpush.msra.mxu0 0.0
  %373 = vmatpush.msra.mxu0 0.0
  %374 = vmatpush.msra.mxu0 0.0
  %375 = vmatpush.msra.mxu0 0.0
  %376 = vmatpush.msra.mxu0 0.0
  %377 = vmatpush.msra.mxu0 0.0
  %378 = vmatpush.msra.mxu0 %v288
  %379 = vmatpush.msra.mxu0 %v287
  %380 = vmatpush.msra.mxu0 %v286
  %381 = vmatpush.msra.mxu0 %v285
  %382 = vmatpush.msra.mxu0 %v284
  %383 = vmatpush.msra.mxu0 %v283
  %384 = vmatpush.msra.mxu0 %v282
  %385 = vmatpush.msra.mxu0 %v281
  %386 = vmatmul.f32.gmra.mxu0 %v347
  %v387 = vpop.f32.mrf.mxu0
  %v388 = vadd.f32 %v308, %v387
  %389 = vmatmul.f32.gmra.mxu0 %v350
  %v390 = vpop.f32.mrf.mxu0
  %v391 = vadd.f32 %v313, %v390
  %392 = vmatmul.f32.gmra.mxu0 %v353
  %v393 = vpop.f32.mrf.mxu0
  %v394 = vadd.f32 %v318, %v393
  %395 = vmatmul.f32.gmra.mxu0 %v356
  %v396 = vpop.f32.mrf.mxu0
  %v397 = vadd.f32 %v323, %v396
  %398 = vmatmul.f32.gmra.mxu0 %v359
  %v399 = vpop.f32.mrf.mxu0
  %v400 = vadd.f32 %v328, %v399
  %401 = vmatmul.f32.gmra.mxu0 %v362
  %v402 = vpop.f32.mrf.mxu0
  %v403 = vadd.f32 %v333, %v402
  %404 = vmatmul.f32.gmra.mxu0 %v365
  %v405 = vpop.f32.mrf.mxu0
  %v406 = vadd.f32 %v338, %v405
  %407 = vmatmul.f32.gmra.mxu0 %v368
  %v408 = vpop.f32.mrf.mxu0
  %v409 = vadd.f32 %v343, %v408
  %410 = vdwg.mxu0
  %v411 = vmax.f32 %v388, 0.0
  %v412 = vmax.f32 %v391, 0.0
  %v413 = vmax.f32 %v394, 0.0
  %v414 = vmax.f32 %v397, 0.0
  %v415 = vmax.f32 %v400, 0.0
  %v416 = vmax.f32 %v403, 0.0
  %v417 = vmax.f32 %v406, 0.0
  %v418 = vmax.f32 %v409, 0.0
  %419 = vst [vmem:[%s5] sm:$0xff] %v411
  %420 = vst [vmem:[%s5 + $0x8] sm:$0xff] %v412
  %421 = vst [vmem:[%s5 + $0x10] sm:$0xff] %v413
  %422 = vst [vmem:[%s5 + $0x18] sm:$0xff] %v414
  %423 = vst [vmem:[%s5 + $0x20] sm:$0xff] %v415
  %424 = vst [vmem:[%s5 + $0x28] sm:$0xff] %v416
  %425 = vst [vmem:[%s5 + $0x30] sm:$0xff] %v417
  %426 = vst [vmem:[%s5 + $0x38] sm:$0xff] %v418
  // Predicated region
  $region22: #{cartpole_mlp_forward.1} parent=0 // pred_check
    _
  $region23: #{cartpole_mlp_forward.1} parent=0 // pred_check_branch
    %428 = sbr.rel (0) target = $region25
  $region24: #{cartpole_mlp_forward.1} parent=0 // pred_region
    _
  $region25: #{cartpole_mlp_forward.1} parent=0 // pred_fallthru
    _
  // Predicated region
  $region26: #{cartpole_mlp_forward.1} parent=0 // pred_check
    _
  $region27: #{cartpole_mlp_forward.1} parent=0 // pred_check_branch
    %430 = sbr.rel (0) target = $region29
  $region28: #{cartpole_mlp_forward.1} parent=0 // pred_region
    _
  $region29: #{cartpole_mlp_forward.1} parent=0 // pred_fallthru
    _

</llo_original>
